<compile_context>
chip_gen: v5e
topology: v5e:2x2
jax: 0.10.0
libtpu: 0.0.40
codegen_flags: <defaults>
</compile_context>

<pallas_src>
import jax
import jax.numpy as jnp
from jax.experimental import pallas as pl
from jax.experimental.pallas import tpu as pltpu

IGNORE_INDEX = -100


def _round_up(x: int, m: int) -> int:
    return ((x + m - 1) // m) * m


def _generation_budgets():
    """Return (per-tile working-set budget, scoped vmem limit) for the current TPU generation."""
    # v7x-safe defaults (64 MiB physical VMEM, 32 MiB default scoped budget).
    working, vmem_limit = 16 * 1024 * 1024, 48 * 1024 * 1024
    try:
        info = pltpu.get_tpu_info()
        if int(info.vmem_capacity_bytes) >= 100 * 1024 * 1024:   # v5e / v6e: 128 MiB physical
            working, vmem_limit = 32 * 1024 * 1024, 64 * 1024 * 1024
    except Exception:
        pass  # unknown generation -> keep the conservative (v7x-shaped) budgets
    return working, vmem_limit


def _wce_kernel(logits_ref, target_ref, cls_w_ref, samp_w_ref, loss_ref):
    """Processes one (TN, C) tile of the batch and writes per-row weighted CE losses."""
    x = logits_ref[...]                               # (TN, C) native dtype (bf16/f16/f32)
    x32 = x.astype(jnp.float32)                       # single f32 upcast, budgeted in tile sizing
    tgt = target_ref[...]                             # (TN, 1) int32
    cw = cls_w_ref[...]                               # (1, C)  f32, resident across grid steps
    sw = samp_w_ref[...]                              # (TN, 1) f32

    tn, c = x32.shape

    # Numerically stable log-sum-exp over the class (lane) dimension.
    m = jnp.max(x32, axis=-1, keepdims=True)                                   # (TN, 1)
    # TODO(synk): on v6e/v7x, if a bundle dump shows the EUP (exp) slot saturated, compute
    #             exp((x32 - m).astype(bf16)) and keep the lane-sum in f32 (not valid on v5e).
    lse = jnp.log(jnp.sum(jnp.exp(x32 - m), axis=-1, keepdims=True)) + m       # (TN, 1)

    # Split one-hot gather: two lane reductions, no full-tile bool->f32 / subtract / broadcast-mul.
    # ignore_index (-100) and any out-of-range target match no column -> w_t = x_t = 0 -> loss 0.
    col = jax.lax.broadcasted_iota(jnp.int32, (tn, c), 1)                      # (TN, C)
    match = col == tgt                                                         # (TN, C) bool
    w_t = jnp.sum(jnp.where(match, cw, 0.0), axis=-1, keepdims=True)           # class_weight[t]
    x_t = jnp.sum(jnp.where(match, x32, 0.0), axis=-1, keepdims=True)          # logit[t]

    # TODO(synk): lane-dense (1, TN) output layout would replace the masked (TN,1) column
    #             stores, but needs a sublane->lane relayout of this column; skipped for
    #             lowering robustness.
    loss_ref[...] = (w_t * (lse - x_t)) * sw                                   # (TN, 1)


def weighted_cross_entropy_loss(logits, target, sample_weight=None, class_weight=None,
                                reduction='mean', block_n=None):
    """Pallas-backed equivalent of WeightedCrossEntropyLoss.forward for (N, C) inputs."""
    n, c = logits.shape

    target2 = target.reshape(n, 1).astype(jnp.int32)
    if sample_weight is None:
        samp_w2 = jnp.ones((n, 1), jnp.float32)
    else:
        samp_w2 = sample_weight.reshape(n, 1).astype(jnp.float32)
    if class_weight is None:
        cls_w2 = jnp.ones((1, c), jnp.float32)
    else:
        cls_w2 = class_weight.reshape(1, c).astype(jnp.float32)

    # --- generation-aware batch-tile sizing -------------------------------------------------
    working, vmem_limit = _generation_budgets()
    itemsize = jnp.dtype(logits.dtype).itemsize
    # Per-row working-set estimate:
    #   2 x double-buffered native logits row  +  ~3 live f32 (TN,C) temps
    #   + ~6 KiB for the lane-padded (TN,1) column streams (target/sample-weight inputs,
    #     f32 output, and the small f32 per-row temps; each pads to a full 128-lane column).
    per_row_bytes = 2 * c * itemsize + 3 * c * 4 + 6 * 1024
    if block_n is None:
        tn = max(8, (working // per_row_bytes) // 8 * 8)
        tn = min(tn, 2048)                       # keep per-tile latency / vreg spilling sane
    else:
        tn = max(8, _round_up(int(block_n), 8))  # explicit override (tests / tuning)
    tn = min(tn, _round_up(n, 8))

    # TODO(synk): for very large vocabularies (C ~ 32k-256k) add a class-tile grid axis with
    #             an online/streaming logsumexp so a full C row need not fit in one VMEM tile.
    n_pad = _round_up(n, tn)
    pad = n_pad - n
    if pad:
        logits = jnp.pad(logits, ((0, pad), (0, 0)))
        # padded rows get ignore_index -> contribute exactly zero loss
        target2 = jnp.pad(target2, ((0, pad), (0, 0)), constant_values=IGNORE_INDEX)
        samp_w2 = jnp.pad(samp_w2, ((0, pad), (0, 0)))

    grid = (n_pad // tn,)

    # TODO(synk): on v7x with small (~2 MiB) tiles, pipeline_mode=pl.Buffered(3) on the logits
    #             BlockSpec can hide DMA jitter; left out to keep a single validated code path.
    loss_rows = pl.pallas_call(
        _wce_kernel,
        out_shape=jax.ShapeDtypeStruct((n_pad, 1), jnp.float32),
        grid=grid,
        in_specs=[
            pl.BlockSpec((tn, c), lambda i: (i, 0)),   # logits, native dtype (cast in-kernel)
            pl.BlockSpec((tn, 1), lambda i: (i, 0)),   # targets
            pl.BlockSpec((1, c), lambda i: (0, 0)),    # class weights (resident)
            pl.BlockSpec((tn, 1), lambda i: (i, 0)),   # per-sample weights
        ],
        out_specs=pl.BlockSpec((tn, 1), lambda i: (i, 0)),   # per-row losses, independent blocks
        compiler_params=pltpu.CompilerParams(
            dimension_semantics=("parallel",),     # megacore-shardable on v7x for ALL reductions
            vmem_limit_bytes=vmem_limit,
        ),
    )(logits, target2, cls_w2, samp_w2)

    loss = loss_rows[:n, 0]
    if reduction == 'mean':
        # Plain mean over all N rows (incl. ignored rows, which are exactly 0) — matches the
        # PyTorch module's loss.mean(); tree-reduced by XLA (no long sequential f32 accumulation).
        return jnp.sum(loss) / jnp.float32(n)
    if reduction == 'sum':
        return jnp.sum(loss)
    return loss


def _reference(logits, target, sample_weight, class_weight, reduction='mean'):
    """Plain-JAX reference mirroring torch.nn.CrossEntropyLoss(reduction='none') semantics."""
    logp = jax.nn.log_softmax(logits.astype(jnp.float32), axis=-1)
    valid = target != IGNORE_INDEX
    safe_t = jnp.where(valid, target, 0)
    nll = -jnp.take_along_axis(logp, safe_t[:, None], axis=-1)[:, 0]
    loss = nll * class_weight[safe_t] * valid.astype(jnp.float32) * sample_weight
    if reduction == 'mean':
        return loss.mean()
    if reduction == 'sum':
        return loss.sum()
    return loss


if __name__ == "__main__":
    # Case 1: small single-tile problem, f32 logits, exercises ignore_index.
    key = jax.random.PRNGKey(0)
    k_logit, k_tgt, k_sw, k_cw = jax.random.split(key, 4)

    N, C = 8, 32
    logits = jax.random.normal(k_logit, (N, C), dtype=jnp.float32)
    target = jax.random.randint(k_tgt, (N,), 0, C, dtype=jnp.int32)
    target = target.at[3].set(IGNORE_INDEX)
    sample_weight = jax.random.uniform(k_sw, (N,), dtype=jnp.float32) + 0.5
    class_weight = jax.random.uniform(k_cw, (C,), dtype=jnp.float32) + 0.5

    for reduction in ('mean', 'sum', 'none'):
        out = jax.block_until_ready(
            weighted_cross_entropy_loss(logits, target, sample_weight, class_weight,
                                        reduction=reduction))
        ref = _reference(logits, target, sample_weight, class_weight, reduction=reduction)
        assert jnp.allclose(out, ref, rtol=1e-5, atol=1e-5), (reduction, out, ref)

    # Case 2: multi-tile grid (batch tiled + padded), bf16 logits (native-dtype HBM path).
    N2, C2 = 20, 128
    k1, k2, k3, k4 = jax.random.split(jax.random.PRNGKey(1), 4)
    logits2 = jax.random.normal(k1, (N2, C2), dtype=jnp.bfloat16)
    target2 = jax.random.randint(k2, (N2,), 0, C2, dtype=jnp.int32)
    target2 = target2.at[0].set(IGNORE_INDEX)
    sw2 = jax.random.uniform(k3, (N2,), dtype=jnp.float32) + 0.5
    cw2 = jax.random.uniform(k4, (C2,), dtype=jnp.float32) + 0.5

    for reduction in ('mean', 'sum', 'none'):
        out = jax.block_until_ready(
            weighted_cross_entropy_loss(logits2, target2, sw2, cw2,
                                        reduction=reduction, block_n=8))
        ref = _reference(logits2, target2, sw2, cw2, reduction=reduction)
        assert jnp.allclose(out, ref, rtol=1e-4, atol=1e-4), (reduction, out, ref)

    print("KERNEL_OK")
</pallas_src>

<mosaic_0001>
module attributes {stable_mosaic.version = 11 : i64} {
  func.func @_wce_kernel(%arg0: i32, %arg1: memref<8x32xf32, #tpu.memory_space<vmem>>, %arg2: memref<8x1xi32, #tpu.memory_space<vmem>>, %arg3: memref<1x32xf32, #tpu.memory_space<vmem>>, %arg4: memref<8x1xf32, #tpu.memory_space<vmem>>, %arg5: memref<8x1xf32, #tpu.memory_space<vmem>>) attributes {dimension_semantics = [#tpu.dimension_semantics<parallel>], iteration_bounds = array<i64: 1>, scalar_prefetch = 0 : i64, scratch_operands = 0 : i64, tpu.core_type = #tpu.core_type<tc>, window_params = [{transform_indices = @transform_0, window_bounds = array<i64: 8, 32>}, {transform_indices = @transform_1, window_bounds = array<i64: 8, 1>}, {pipeline_mode = #tpu.pipeline_mode<synchronous>, transform_indices = @transform_2, window_bounds = array<i64: 1, 32>}, {transform_indices = @transform_3, window_bounds = array<i64: 8, 1>}, {transform_indices = @transform_4, window_bounds = array<i64: 8, 1>}]} {
    %c0 = arith.constant 0 : index
    %c0_0 = arith.constant 0 : index
    %0 = vector.load %arg1[%c0, %c0_0] : memref<8x32xf32, #tpu.memory_space<vmem>>, vector<8x32xf32>
    %c0_1 = arith.constant 0 : index
    %c0_2 = arith.constant 0 : index
    %1 = vector.load %arg2[%c0_1, %c0_2] : memref<8x1xi32, #tpu.memory_space<vmem>>, vector<8x1xi32>
    %c0_3 = arith.constant 0 : index
    %c0_4 = arith.constant 0 : index
    %2 = vector.load %arg3[%c0_3, %c0_4] : memref<1x32xf32, #tpu.memory_space<vmem>>, vector<1x32xf32>
    %c0_5 = arith.constant 0 : index
    %c0_6 = arith.constant 0 : index
    %3 = vector.load %arg4[%c0_5, %c0_6] : memref<8x1xf32, #tpu.memory_space<vmem>>, vector<8x1xf32>
    %cst = arith.constant dense<0xFF800000> : vector<8xf32>
    %4 = vector.multi_reduction <maximumf>, %0, %cst [1] : vector<8x32xf32> to vector<8xf32>
    %5 = vector.shape_cast %4 : vector<8xf32> to vector<8x1xf32>
    %6 = vector.broadcast %5 : vector<8x1xf32> to vector<8x32xf32>
    %7 = arith.subf %0, %6 : vector<8x32xf32>
    %8 = math.exp %7 : vector<8x32xf32>
    %cst_7 = arith.constant dense<0.000000e+00> : vector<8xf32>
    %9 = vector.multi_reduction <add>, %8, %cst_7 [1] : vector<8x32xf32> to vector<8xf32>
    %10 = vector.shape_cast %9 : vector<8xf32> to vector<8x1xf32>
    %11 = math.log %10 : vector<8x1xf32>
    %12 = arith.addf %11, %5 : vector<8x1xf32>
    %13 = tpu.iota {dimensions = array<i32: 1>} : vector<8x32xi32>
    %14 = vector.broadcast %1 : vector<8x1xi32> to vector<8x32xi32>
    %15 = arith.cmpi eq, %13, %14 : vector<8x32xi32>
    %cst_8 = arith.constant 0.000000e+00 : f32
    %16 = vector.shape_cast %2 : vector<1x32xf32> to vector<1x32xf32>
    %17 = vector.broadcast %16 : vector<1x32xf32> to vector<8x32xf32>
    %18 = vector.broadcast %cst_8 : f32 to vector<8x32xf32>
    %19 = arith.select %15, %17, %18 : vector<8x32xi1>, vector<8x32xf32>
    %cst_9 = arith.constant dense<0.000000e+00> : vector<8xf32>
    %20 = vector.multi_reduction <add>, %19, %cst_9 [1] : vector<8x32xf32> to vector<8xf32>
    %21 = vector.shape_cast %20 : vector<8xf32> to vector<8x1xf32>
    %cst_10 = arith.constant 0.000000e+00 : f32
    %22 = vector.broadcast %cst_10 : f32 to vector<8x32xf32>
    %23 = arith.select %15, %0, %22 : vector<8x32xi1>, vector<8x32xf32>
    %cst_11 = arith.constant dense<0.000000e+00> : vector<8xf32>
    %24 = vector.multi_reduction <add>, %23, %cst_11 [1] : vector<8x32xf32> to vector<8xf32>
    %25 = vector.shape_cast %24 : vector<8xf32> to vector<8x1xf32>
    %26 = arith.subf %12, %25 : vector<8x1xf32>
    %27 = arith.mulf %21, %26 : vector<8x1xf32>
    %28 = arith.mulf %27, %3 : vector<8x1xf32>
    %c0_12 = arith.constant 0 : index
    %c0_13 = arith.constant 0 : index
    %29 = vector.load %arg5[%c0_12, %c0_13] : memref<8x1xf32, #tpu.memory_space<vmem>>, vector<8x1xf32>
    tpu.vector_store %arg5[%c0_12, %c0_13], %28 {strides = array<i32>} : memref<8x1xf32, #tpu.memory_space<vmem>>, vector<8x1xf32>,
    return
  }
  func.func @transform_0(%arg0: i32) -> (i32, i32) {
    %c0_i32 = arith.constant 0 : i32
    %c0_i32_0 = arith.constant 0 : i32
    return %arg0, %c0_i32 : i32, i32
  }
  func.func @transform_1(%arg0: i32) -> (i32, i32) {
    %c0_i32 = arith.constant 0 : i32
    %c0_i32_0 = arith.constant 0 : i32
    return %arg0, %c0_i32 : i32, i32
  }
  func.func @transform_2(%arg0: i32) -> (i32, i32) {
    %c0_i32 = arith.constant 0 : i32
    %c0_i32_0 = arith.constant 0 : i32
    %c0_i32_1 = arith.constant 0 : i32
    return %c0_i32, %c0_i32_0 : i32, i32
  }
  func.func @transform_3(%arg0: i32) -> (i32, i32) {
    %c0_i32 = arith.constant 0 : i32
    %c0_i32_0 = arith.constant 0 : i32
    return %arg0, %c0_i32 : i32, i32
  }
  func.func @transform_4(%arg0: i32) -> (i32, i32) {
    %c0_i32 = arith.constant 0 : i32
    %c0_i32_0 = arith.constant 0 : i32
    return %arg0, %c0_i32 : i32, i32
  }
}

</mosaic_0001>

<llo_original>
// kernel: tpu_custom_call.1
$region0: #{tpu_custom_call.1}
  #allocation0 [shape = 'u32[]', space=smem, size = 0x4, offset = 0x4, fixed_abs, tag = 'smem constant byte address 0x4 - core index']
  #allocation1 [shape = 'u32[72,128]{1,0:T(1,128)}', space=vmem, size = 0x9000, scoped, tag = 'internal scratch']
  %s0 = inlined_call_operand.vmem [shape: f32[8,32], index: 0, kind: input, shape index: {}]
  %s1 = inlined_call_operand.vmem [shape: s32[8,1], index: 1, kind: input, shape index: {}]
  %s2 = inlined_call_operand.vmem [shape: f32[1,32], index: 2, kind: input, shape index: {}]
  %s3 = inlined_call_operand.vmem [shape: f32[8,1], index: 3, kind: input, shape index: {}]
  %s4 = inlined_call_operand.vmem [shape: f32[8,1], index: 4, kind: output, shape index: {}]
  %s5 = sld [smem:[#allocation0]]
  $region26: #{tpu_custom_call.1} parent=0
    _
  %s7 = ssub.s32 1, %s5
  %s8 = scalar_select 0, %s7, %s5
  // Predicated region
  $region2: #{tpu_custom_call.1} parent=0 // pred_check
    _
  $region3: #{tpu_custom_call.1} parent=0 // pred_check_branch
    %10 = sbr.rel (0) target = $region5
  $region4: #{tpu_custom_call.1} parent=0 // pred_region
    _
  $region5: #{tpu_custom_call.1} parent=0 // pred_fallthru
    _
  // Predicated region
  $region6: #{tpu_custom_call.1} parent=0 // pred_check
    _
  $region7: #{tpu_custom_call.1} parent=0 // pred_check_branch
    %12 = sbr.rel (0) target = $region9
  $region8: #{tpu_custom_call.1} parent=0 // pred_region
    _
  $region9: #{tpu_custom_call.1} parent=0 // pred_fallthru
    _
  // Predicated region
  $region10: #{tpu_custom_call.1} parent=0 // pred_check
    _
  $region11: #{tpu_custom_call.1} parent=0 // pred_check_branch
    %14 = sbr.rel (0) target = $region13
  $region12: #{tpu_custom_call.1} parent=0 // pred_region
    _
  $region13: #{tpu_custom_call.1} parent=0 // pred_fallthru
    _
  // Predicated region
  $region14: #{tpu_custom_call.1} parent=0 // pred_check
    _
  $region15: #{tpu_custom_call.1} parent=0 // pred_check_branch
    %16 = sbr.rel (0) target = $region17
  $region16: #{tpu_custom_call.1} parent=0 // pred_region
    _
  $region17: #{tpu_custom_call.1} parent=0 // pred_fallthru
    _
  %v17 = vld [vmem:[%s0] sm:$0xff]
  %v18 = vld [vmem:[%s1] sm:$0xff]
  %v19 = vld [vmem:[%s2] sm:$0x1]
  %v20 = vld [vmem:[%s3] sm:$0xff]
  %vm21 = vcmask 261120
  %v22 = vsel %vm21, %v17, -inf
  %23 = vmax.xlane.f32.xlu0 %v22
  %v24 = vpop.xlane.xlu0 %23
  %v25 = vsub.f32 %v17, %v24
  %v26 = vmul.f32 %v25, 1.442695
  %v27 = vpow.pop %v26
  %v28 = vsel %vm21, %v27, 0.0
  %29 = vadd.xlane.f32.xlu0 %v28
  %v30 = vpop.xlane.xlu0 %29
  %v31 = vlog2.pop %v30
  %v32 = vmul.f32 %v31, 0.6931472
  %v33 = vadd.f32 %v32, %v24
  %v34 = vlaneseq
  %v35 = vand.u32 %v34, 127
  %36 = vset.pattern.permute.xlu0 0
  %37 = vperm.xlu0 %36, %v18
  %v38 = vpop.permute.xlu0 %37
  %vm39 = vcmp.eq.s32.totalorder %v35, %v38
  %v41 = vperm.slane %v19, 0
  %v43 = vsel %vm39, %v41, 0.0
  %v44 = vsel %vm21, %v43, 0.0
  %45 = vadd.xlane.f32.xlu0 %v44
  %v46 = vpop.xlane.xlu0 %45
  %v47 = vsel %vm39, %v17, 0.0
  %v48 = vsel %vm21, %v47, 0.0
  %49 = vadd.xlane.f32.xlu0 %v48
  %v50 = vpop.xlane.xlu0 %49
  %v51 = vsub.f32 %v33, %v50
  %v52 = vmul.f32 %v46, %v51
  %v53 = vmul.f32 %v52, %v20
  %vm54 = vcmask 7168
  %55 = vst.msk [vmem:[%s4] sm:$0xff] %vm54, %v53
  // Predicated region
  $region18: #{tpu_custom_call.1} parent=0 // pred_check
    _
  $region19: #{tpu_custom_call.1} parent=0 // pred_check_branch
    %57 = sbr.rel (0) target = $region21
  $region20: #{tpu_custom_call.1} parent=0 // pred_region
    _
  $region21: #{tpu_custom_call.1} parent=0 // pred_fallthru
    _
  // Predicated region
  $region22: #{tpu_custom_call.1} parent=0 // pred_check
    _
  $region23: #{tpu_custom_call.1} parent=0 // pred_check_branch
    %59 = sbr.rel (0) target = $region25
  $region24: #{tpu_custom_call.1} parent=0 // pred_region
    _
  $region25: #{tpu_custom_call.1} parent=0 // pred_fallthru
    _

</llo_original>
